<compile_context>
chip_gen: v6e
topology: v6e:2x2x1
jax: 0.10.0
libtpu: 0.0.40
codegen_flags: <defaults>
</compile_context>

<pallas_src>
import functools

import jax
import jax.numpy as jnp
from jax.experimental import pallas as pl
from jax.experimental.pallas import tpu as pltpu


# ------------------------------- Pallas kernel --------------------------------

def _rec_head_kernel(xT_ref, wT_ref, b_ref, outT_ref):
    """outT[:, tile] = W_tot^T @ x^T[:, tile] + b_tot  (single fused matmul)."""
    acc = jnp.dot(wT_ref[...], xT_ref[...],
                  preferred_element_type=jnp.float32)        # [out_dim, TM] f32
    outT_ref[...] = (acc + b_ref[...]).astype(outT_ref.dtype)


# ------------------------------- wrapper ---------------------------------------

def _round_up(x, m):
    return ((x + m - 1) // m) * m


def mask_sketch_rec_pallas(hidden_states, params, cls_in_input, rel_in_input,
                           compute_dtype=jnp.float32, tm_cap=2048):
    """MaskSketchRecModel.forward.

    hidden_states: [B, L, H]
    params:        list of (W [d_in, d_out], b [1, d_out]) per re_fc layer.
    compute_dtype: dtype fed to the MXU (f32 or bf16); accumulation stays f32.
    tm_cap:        max token-tile width (multiple of 128).
    """
    B, L, H = hidden_states.shape
    off = cls_in_input + rel_in_input
    S = L - off
    M = B * S
    out_dim = params[-1][0].shape[1]
    out_dtype = hidden_states.dtype

    # ---- collapse the activation-free linear chain (tiny, one-time) ----------
    W_tot, b_tot = params[0]                                   # [H,d1], [1,d1]
    for w, b in params[1:]:
        W_tot = jnp.dot(W_tot, w, precision=jax.lax.Precision.HIGHEST)
        b_tot = jnp.dot(b_tot, w, precision=jax.lax.Precision.HIGHEST) + b
    wT = W_tot.T                                               # [out_dim, H]
    bcol = b_tot.T.astype(jnp.float32)                         # [out_dim, 1]

    # ---- lane-dense transposed layout: tokens on the 128-lane axis -----------
    x2d = hidden_states[:, off:, :].reshape(M, H)              # layout plumbing
    xT = x2d.T                                                 # [H, M]

    # token tile: multiple of 128 (lane-dense, unmasked stores), capped
    TM = min(_round_up(M, 128), _round_up(tm_cap, 128))
    Mp = _round_up(M, TM)
    if Mp > M:
        xT = jnp.pad(xT, ((0, 0), (0, Mp - M)))
    grid = (Mp // TM,)

    x_c = xT.astype(compute_dtype)
    w_c = wT.astype(compute_dtype)

    itemsize = jnp.dtype(compute_dtype).itemsize
    cost = pl.CostEstimate(
        flops=2 * M * H * out_dim,
        transcendentals=0,
        bytes_accessed=M * H * itemsize
        + M * out_dim * jnp.dtype(out_dtype).itemsize
        + (H * out_dim + out_dim) * itemsize,
    )

    outT = pl.pallas_call(
        _rec_head_kernel,
        out_shape=jax.ShapeDtypeStruct((out_dim, Mp), out_dtype),
        grid=grid,
        in_specs=[
            pl.BlockSpec((H, TM), lambda i: (0, i)),           # activations (tiled)
            pl.BlockSpec((out_dim, H), lambda i: (0, 0)),      # collapsed weight
            pl.BlockSpec((out_dim, 1), lambda i: (0, 0)),      # collapsed bias
        ],
        out_specs=pl.BlockSpec((out_dim, TM), lambda i: (0, i)),
        compiler_params=pltpu.CompilerParams(
            dimension_semantics=("parallel",)),
        cost_estimate=cost,
    )(x_c, w_c, bcol)

    return outT[:, :M].T.reshape(B, S, out_dim)


# ---------------------------- pure-JAX reference --------------------------------

def _ref_mask_sketch_rec(hidden_states, params, cls_in_input, rel_in_input):
    x = hidden_states[:, cls_in_input + rel_in_input:, :]
    for w, b in params:
        x = jnp.dot(x, w, precision=jax.lax.Precision.HIGHEST) + b[0]
    return x


# ------------------------------- parameter init ---------------------------------

def init_params(key, dims):
    params = []
    keys = jax.random.split(key, len(dims) - 1)
    for i, k in enumerate(keys):
        kw, kb = jax.random.split(k)
        w = jax.random.normal(kw, (dims[i], dims[i + 1]), jnp.float32) * 0.1
        b = jax.random.normal(kb, (1, dims[i + 1]), jnp.float32) * 0.1
        params.append((w, b))
    return params


# ------------------------------------ main ---------------------------------------

if __name__ == "__main__":
    # MaskSketchRecModel(rec_layers_setting=[64, 48], hidden_dim=32, input_dim=5,
    #                    cls_in_input=1, rel_in_input=1)
    # -> layer dims [32, 64, 48, 5], slice offset 2.
    rec_layers_setting = [64, 48]
    hidden_dim = 32
    input_dim = 5
    cls_in_input = 1
    rel_in_input = 1

    B, seq_len = 2, 8
    L = seq_len + cls_in_input + rel_in_input          # 10
    H = hidden_dim

    key = jax.random.PRNGKey(0)
    k_x, k_p = jax.random.split(key)

    hidden_states = jax.random.normal(k_x, (B, L, H), jnp.float32)

    dims = [hidden_dim] + list(rec_layers_setting) + [input_dim]
    params = init_params(k_p, dims)

    ref = _ref_mask_sketch_rec(hidden_states, params, cls_in_input, rel_in_input)

    # f32 compute path (tight check against the f32 reference)
    out = mask_sketch_rec_pallas(hidden_states, params, cls_in_input, rel_in_input,
                                 compute_dtype=jnp.float32)
    out = jax.block_until_ready(out)
    assert out.shape == (B, seq_len, input_dim), f"bad shape {out.shape}"
    assert jnp.allclose(out, ref, rtol=1e-3, atol=1e-4), "f32 mismatch vs reference"

    # bf16 compute path (HBM-bandwidth lever for large M; looser tolerance)
    out_bf16 = mask_sketch_rec_pallas(hidden_states, params, cls_in_input,
                                      rel_in_input, compute_dtype=jnp.bfloat16)
    out_bf16 = jax.block_until_ready(out_bf16)
    assert out_bf16.shape == (B, seq_len, input_dim), f"bad shape {out_bf16.shape}"
    assert jnp.allclose(out_bf16, ref, rtol=5e-2, atol=5e-2), "bf16 mismatch vs reference"

    print("KERNEL_OK")
</pallas_src>

<mosaic_0001>
module attributes {stable_mosaic.version = 11 : i64} {
  func.func @_rec_head_kernel(%arg0: i32, %arg1: memref<32x128xf32, #tpu.memory_space<vmem>>, %arg2: memref<5x32xf32, #tpu.memory_space<vmem>>, %arg3: memref<5x1xf32, #tpu.memory_space<vmem>>, %arg4: memref<5x128xf32, #tpu.memory_space<vmem>>) attributes {dimension_semantics = [#tpu.dimension_semantics<parallel>], iteration_bounds = array<i64: 1>, scalar_prefetch = 0 : i64, scratch_operands = 0 : i64, tpu.core_type = #tpu.core_type<tc>, window_params = [{transform_indices = @transform_0, window_bounds = array<i64: 32, 128>}, {pipeline_mode = #tpu.pipeline_mode<synchronous>, transform_indices = @transform_1, window_bounds = array<i64: 5, 32>}, {pipeline_mode = #tpu.pipeline_mode<synchronous>, transform_indices = @transform_2, window_bounds = array<i64: 5, 1>}, {transform_indices = @transform_3, window_bounds = array<i64: 5, 128>}]} {
    %c0 = arith.constant 0 : index
    %c0_0 = arith.constant 0 : index
    %0 = vector.load %arg2[%c0, %c0_0] : memref<5x32xf32, #tpu.memory_space<vmem>>, vector<5x32xf32>
    %c0_1 = arith.constant 0 : index
    %c0_2 = arith.constant 0 : index
    %1 = vector.load %arg1[%c0_1, %c0_2] : memref<32x128xf32, #tpu.memory_space<vmem>>, vector<32x128xf32>
    %cst = arith.constant dense<0.000000e+00> : vector<5x128xf32>
    %2 = tpu.matmul %0, %1, %cst {dimension_numbers = #tpu.dot_dimension_numbers<[1], [0], [0], [1], [0, 0, 1, 1], [], []>} : vector<5x32xf32>, vector<32x128xf32>, vector<5x128xf32> -> vector<5x128xf32>
    %c0_3 = arith.constant 0 : index
    %c0_4 = arith.constant 0 : index
    %3 = vector.load %arg3[%c0_3, %c0_4] : memref<5x1xf32, #tpu.memory_space<vmem>>, vector<5x1xf32>
    %4 = vector.broadcast %3 : vector<5x1xf32> to vector<5x128xf32>
    %5 = arith.addf %2, %4 : vector<5x128xf32>
    %c0_5 = arith.constant 0 : index
    %c0_6 = arith.constant 0 : index
    %6 = vector.load %arg4[%c0_5, %c0_6] : memref<5x128xf32, #tpu.memory_space<vmem>>, vector<5x128xf32>
    tpu.vector_store %arg4[%c0_5, %c0_6], %5 {strides = array<i32>} : memref<5x128xf32, #tpu.memory_space<vmem>>, vector<5x128xf32>,
    return
  }
  func.func @transform_0(%arg0: i32) -> (i32, i32) {
    %c0_i32 = arith.constant 0 : i32
    %c0_i32_0 = arith.constant 0 : i32
    return %c0_i32, %arg0 : i32, i32
  }
  func.func @transform_1(%arg0: i32) -> (i32, i32) {
    %c0_i32 = arith.constant 0 : i32
    %c0_i32_0 = arith.constant 0 : i32
    %c0_i32_1 = arith.constant 0 : i32
    return %c0_i32, %c0_i32_0 : i32, i32
  }
  func.func @transform_2(%arg0: i32) -> (i32, i32) {
    %c0_i32 = arith.constant 0 : i32
    %c0_i32_0 = arith.constant 0 : i32
    %c0_i32_1 = arith.constant 0 : i32
    return %c0_i32, %c0_i32_0 : i32, i32
  }
  func.func @transform_3(%arg0: i32) -> (i32, i32) {
    %c0_i32 = arith.constant 0 : i32
    %c0_i32_0 = arith.constant 0 : i32
    return %c0_i32, %arg0 : i32, i32
  }
}

</mosaic_0001>

<llo_original>
// kernel: tpu_custom_call.1
$region0: #{tpu_custom_call.1}
  #allocation0 [shape = 'u32[]', space=smem, size = 0x4, offset = 0x4, fixed_abs, tag = 'smem constant byte address 0x4 - core index']
  #allocation1 [shape = 'u32[144,128]{1,0:T(1,128)}', space=vmem, size = 0x12000, scoped, tag = 'internal scratch']
  %s0 = inlined_call_operand.hbm [shape: f32[32,128], index: 0, kind: input, shape index: {}]
  %s1 = inlined_call_operand.vmem [shape: f32[5,32], index: 1, kind: input, shape index: {}]
  %s2 = inlined_call_operand.vmem [shape: f32[5,1], index: 2, kind: input, shape index: {}]
  %s3 = inlined_call_operand.hbm [shape: f32[5,128], index: 3, kind: output, shape index: {}]
  %s4 = sld [smem:[#allocation0]]
  $region26: #{tpu_custom_call.1} parent=0
    _
  %s6 = ssub.s32 1, %s4
  %s7 = scalar_select 0, %s6, %s4
  $region1: #{tpu_custom_call.1} parent=0
    #allocation2 [shape = 'u8[16384]{0}', space=vmem, size = 0x4000, scoped, tag = 'input window, operand 0, single buffered']
    #allocation3 [shape = 's32[1]{0}', space=sflag, size = 0x4, scoped, tag = 'scoped memory for tpu_custom_call.1']
    #allocation4 [shape = 's32[1]{0}', space=sflag, size = 0x4, scoped, tag = 'scoped memory for tpu_custom_call.1']
    #allocation5 [shape = 'u8[4096]{0}', space=vmem, size = 0x1000, scoped, tag = 'output window, operand 0, single buffered']
    %8 = vsyncpa [#allocation3], 0
    %9 = vsyncpa [#allocation4], 0
    // Predicated region
    $region2: #{tpu_custom_call.1} parent=1 // pred_check
      _
    $region3: #{tpu_custom_call.1} parent=1 // pred_check_branch
      %11 = sbr.rel (0) target = $region5
    $region4: #{tpu_custom_call.1} parent=1 // pred_region
      %s13 = ssub.s32 512, 512
      %14 = vsyncadd [#allocation3], %s13
      %s15 = sshll.u32 [#allocation2], 4
      %s16 = int_to_ptr.vmem [resolvable:$true] %s15
      %21 = dma.hbm_to_vmem [thread:$0]  %s0, 512, %s16, [#allocation3], 128, 128, 8
    $region5: #{tpu_custom_call.1} parent=1 // pred_fallthru
      _
    // Predicated region
    $region6: #{tpu_custom_call.1} parent=1 // pred_check
      _
    $region7: #{tpu_custom_call.1} parent=1 // pred_check_branch
      %23 = sbr.rel (0) target = $region9
    $region8: #{tpu_custom_call.1} parent=1 // pred_region
      _
    $region9: #{tpu_custom_call.1} parent=1 // pred_fallthru
      _
    // Predicated region
    $region10: #{tpu_custom_call.1} parent=1 // pred_check
      _
    $region11: #{tpu_custom_call.1} parent=1 // pred_check_branch
      %25 = sbr.rel (0) target = $region13
    $region12: #{tpu_custom_call.1} parent=1 // pred_region
      _
    $region13: #{tpu_custom_call.1} parent=1 // pred_fallthru
      _
    // Predicated region
    $region14: #{tpu_custom_call.1} parent=1 // pred_check
      _
    $region15: #{tpu_custom_call.1} parent=1 // pred_check_branch
      %27 = sbr.rel (0) target = $region17
    $region16: #{tpu_custom_call.1} parent=1 // pred_region
      %28 = dma.done [#allocation3], 512
    $region17: #{tpu_custom_call.1} parent=1 // pred_fallthru
      _
    %v29 = vld [vmem:[%s1] sm:$0x1f]
    %v30 = vld [vmem:[#allocation2] sm:$0xff]
    %v31 = vld [vmem:[#allocation2 + $0x8] sm:$0xff]
    %v32 = vld [vmem:[#allocation2 + $0x10] sm:$0xff]
    %v33 = vld [vmem:[#allocation2 + $0x18] sm:$0xff]
    %v34 = vld [vmem:[%s2] sm:$0x1f]
    %36 = vset.pattern.permute.xlu0 0
    %37 = vperm.xlu0 %36, %v34
    %v38 = vpop.permute.xlu0 %37
    %vm40 = vcmask 261120
    %v42 = vsel %vm40, %v29, 0
    %44 = vmatprep.subr.mxu0 0.0
    %45 = vmatpush1.msra.mxu0 0.0
    %46 = vmatprep.subr.mxu0 0.0
    %47 = vmatpush1.msra.mxu0 0.0
    %48 = vmatprep.subr.mxu0 0.0
    %49 = vmatpush1.msra.mxu0 0.0
    %50 = vmatprep.subr.mxu0 0.0
    %51 = vmatpush1.msra.mxu0 0.0
    %52 = vmatprep.subr.mxu0 0.0
    %53 = vmatpush1.msra.mxu0 0.0
    %54 = vmatprep.subr.mxu0 0.0
    %55 = vmatpush1.msra.mxu0 0.0
    %56 = vmatprep.subr.mxu0 0.0
    %57 = vmatpush1.msra.mxu0 0.0
    %58 = vmatprep.subr.mxu0 0.0
    %59 = vmatpush1.msra.mxu0 0.0
    %60 = vmatprep.subr.mxu0 0.0
    %61 = vmatpush1.msra.mxu0 0.0
    %62 = vmatprep.subr.mxu0 0.0
    %63 = vmatpush1.msra.mxu0 0.0
    %64 = vmatprep.subr.mxu0 0.0
    %65 = vmatpush1.msra.mxu0 0.0
    %66 = vmatprep.subr.mxu0 0.0
    %67 = vmatpush1.msra.mxu0 0.0
    %68 = vmatprep.subr.mxu0 0.0
    %69 = vmatpush1.msra.mxu0 %v33
    %70 = vmatprep.subr.mxu0 0.0
    %71 = vmatpush1.msra.mxu0 %v32
    %72 = vmatprep.subr.mxu0 0.0
    %73 = vmatpush1.msra.mxu0 %v31
    %74 = vmatprep.subr.mxu0 0.0
    %75 = vmatpush1.msra.mxu0 %v30
    %76 = vmatprep.subr.mxu0 0.0
    %77 = vmatpush2.msra.mxu0 0.0
    %78 = vmatprep.subr.mxu0 0.0
    %79 = vmatpush2.msra.mxu0 0.0
    %80 = vmatprep.subr.mxu0 0.0
    %81 = vmatpush2.msra.mxu0 0.0
    %82 = vmatprep.subr.mxu0 0.0
    %83 = vmatpush2.msra.mxu0 0.0
    %84 = vmatprep.subr.mxu0 0.0
    %85 = vmatpush2.msra.mxu0 0.0
    %86 = vmatprep.subr.mxu0 0.0
    %87 = vmatpush2.msra.mxu0 0.0
    %88 = vmatprep.subr.mxu0 0.0
    %89 = vmatpush2.msra.mxu0 0.0
    %90 = vmatprep.subr.mxu0 0.0
    %91 = vmatpush2.msra.mxu0 0.0
    %92 = vmatprep.subr.mxu0 0.0
    %93 = vmatpush2.msra.mxu0 0.0
    %94 = vmatprep.subr.mxu0 0.0
    %95 = vmatpush2.msra.mxu0 0.0
    %96 = vmatprep.subr.mxu0 0.0
    %97 = vmatpush2.msra.mxu0 0.0
    %98 = vmatprep.subr.mxu0 0.0
    %99 = vmatpush2.msra.mxu0 0.0
    %100 = vmatprep.subr.mxu0 0.0
    %101 = vmatpush2.msra.mxu0 0.0
    %102 = vmatprep.subr.mxu0 0.0
    %103 = vmatpush2.msra.mxu0 0.0
    %104 = vmatprep.subr.mxu0 0.0
    %105 = vmatpush2.msra.mxu0 0.0
    %106 = vmatprep.subr.mxu0 0.0
    %107 = vmatpush2.msra.mxu0 0.0
    %108 = vmatprep.mubr.f32.mxu0 0.0
    %109 = vmatmul.mubr.f32.gmra.mxu0 %v42
    %v110 = vpop.f32.mrf.mxu0
    %v111 = vadd.f32 %v38, %v110
    %v112 = vpop.f32.mrf.mxu0
    %113 = vdwg.mxu0
    %114 = vst [vmem:[#allocation5] sm:$0x1f] %v111
    // Predicated region
    $region18: #{tpu_custom_call.1} parent=1 // pred_check
      _
    $region19: #{tpu_custom_call.1} parent=1 // pred_check_branch
      %116 = sbr.rel (0) target = $region21
    $region20: #{tpu_custom_call.1} parent=1 // pred_region
      %s118 = ssub.s32 128, 128
      %119 = vsyncadd [#allocation4], %s118
      %s121 = sshll.u32 [#allocation5], 4
      %s122 = int_to_ptr.vmem [resolvable:$true] %s121
      %124 = dma.vmem_to_hbm [thread:$0]  %s122, 128, %s3, [#allocation4]
    $region21: #{tpu_custom_call.1} parent=1 // pred_fallthru
      _
    // Predicated region
    $region22: #{tpu_custom_call.1} parent=1 // pred_check
      _
    $region23: #{tpu_custom_call.1} parent=1 // pred_check_branch
      %126 = sbr.rel (0) target = $region25
    $region24: #{tpu_custom_call.1} parent=1 // pred_region
      %127 = dma.done [#allocation4], 128
    $region25: #{tpu_custom_call.1} parent=1 // pred_fallthru
      _
    %128 = vsyncpa [#allocation3], 1
    %129 = vsyncpa [#allocation4], 1

</llo_original>
